<compile_context>
chip_gen: v7x
topology: tpu7x:2x2x1
jax: 0.10.0
libtpu: 0.0.40
codegen_flags: <defaults>
</compile_context>

<pallas_src>
import jax
import jax.numpy as jnp
from jax.experimental import pallas as pl
from jax.experimental.pallas import tpu as pltpu

LANE = 128


# -----------------------------------------------------------------------------
# Kernels
# -----------------------------------------------------------------------------
def _sage1_kernel(a_ref, xk_ref, xi_ref, inv_ref, wl_ref, wr_ref, b_ref,
                  h_ref, acc_ref):
    """h = relu(((A_cnt @ x) * inv_deg) @ Wl + b + x @ Wr); reduce over axis 1."""
    k = pl.program_id(1)

    @pl.when(k == 0)
    def _():
        acc_ref[...] = jnp.zeros_like(acc_ref)

    # A is stored as int8 edge counts; cast to bf16 for the MXU (cheap VPU op,
    # hidden under the DMA-bound loop). 1/deg is applied once in the epilogue.
    a = a_ref[...].astype(jnp.bfloat16)
    acc_ref[...] += jnp.dot(a, xk_ref[...], preferred_element_type=jnp.float32)

    @pl.when(k == pl.num_programs(1) - 1)
    def _():
        agg = (acc_ref[...] * inv_ref[...]).astype(jnp.bfloat16)
        h = (jnp.dot(agg, wl_ref[...], preferred_element_type=jnp.float32)
             + b_ref[...]
             + jnp.dot(xi_ref[...], wr_ref[...],
                       preferred_element_type=jnp.float32))
        # NOTE: padded rows [N:n_pad] come out as relu(bias) (nonzero). This is
        # harmless: A's padded columns are zero (so they never feed layer-2
        # aggregation) and padded output rows are sliced off in the wrapper.
        h_ref[...] = jnp.maximum(h, 0.0).astype(h_ref.dtype)


def _sage2_lin_kernel(a_ref, hk_ref, hi_ref, inv_ref, wl_ref, wr_ref, b_ref,
                      wlin_ref, blin_ref, o_ref, acc_ref):
    """out = relu(((A_cnt @ h1) * inv_deg) @ Wl2 + b2 + h1 @ Wr2) @ Wlin + blin."""
    k = pl.program_id(1)

    @pl.when(k == 0)
    def _():
        acc_ref[...] = jnp.zeros_like(acc_ref)

    a = a_ref[...].astype(jnp.bfloat16)
    acc_ref[...] += jnp.dot(a, hk_ref[...], preferred_element_type=jnp.float32)

    @pl.when(k == pl.num_programs(1) - 1)
    def _():
        agg = (acc_ref[...] * inv_ref[...]).astype(jnp.bfloat16)
        h2 = (jnp.dot(agg, wl_ref[...], preferred_element_type=jnp.float32)
              + b_ref[...]
              + jnp.dot(hi_ref[...], wr_ref[...],
                        preferred_element_type=jnp.float32))
        h2 = jnp.maximum(h2, 0.0).astype(jnp.bfloat16)
        o_ref[...] = (jnp.dot(h2, wlin_ref[...],
                              preferred_element_type=jnp.float32)
                      + blin_ref[...]).astype(o_ref.dtype)


# -----------------------------------------------------------------------------
# Wrapper
# -----------------------------------------------------------------------------
def _round_up(v, m):
    return ((v + m - 1) // m) * m


def _largest_tile(n_pad, cap):
    """Largest multiple-of-128 divisor of n_pad that is <= cap (>= 128)."""
    best = LANE
    t = LANE
    limit = min(cap, n_pad)
    while t <= limit:
        if n_pad % t == 0:
            best = t
        t += LANE
    return best


def item_gnn_encoder(x, edge_index, params):
    """x: [N, F_in] f32, edge_index: [2, E] int32, params: dict of weights."""
    N, f_in = x.shape
    hidden = params["conv1_lin_l_w"].shape[0]
    out_ch = params["lin_w"].shape[0]

    # --- padding: N to 128 first, then tiles chosen as divisors of n_pad ---
    n_pad = _round_up(N, LANE)
    f_pad = _round_up(f_in, LANE)
    h_pad = _round_up(hidden, LANE)
    o_pad = _round_up(out_ch, LANE)

    # --- adjacency glue: int8 edge counts scattered straight into the padded
    #     buffer (one O(N^2) 1-byte pass), O(E) degree via scatter-add. ---
    src, dst = edge_index[0], edge_index[1]
    a_p = jnp.zeros((n_pad, n_pad), jnp.int8).at[dst, src].add(
        jnp.ones(src.shape, jnp.int8))
    deg = jnp.zeros((n_pad,), jnp.float32).at[dst].add(1.0)
    inv_deg = jnp.where(deg > 0, 1.0 / deg, 0.0).reshape(n_pad, 1)  # iso/pad -> 0

    x_p = jnp.zeros((n_pad, f_pad), jnp.bfloat16)
    x_p = x_p.at[:N, :f_in].set(x.astype(jnp.bfloat16))

    def pad_w(w, rows, cols):              # [out, in] -> padded [in, out], bf16
        wt = w.T.astype(jnp.bfloat16)
        return jnp.zeros((rows, cols), jnp.bfloat16).at[
            :wt.shape[0], :wt.shape[1]].set(wt)

    def pad_b(b, cols):                    # [out] -> padded [1, out], f32
        return jnp.zeros((1, cols), jnp.float32).at[0, :b.shape[0]].set(b)

    wl1 = pad_w(params["conv1_lin_l_w"], f_pad, h_pad)
    wr1 = pad_w(params["conv1_lin_r_w"], f_pad, h_pad)
    bl1 = pad_b(params["conv1_lin_l_b"], h_pad)
    wl2 = pad_w(params["conv2_lin_l_w"], h_pad, h_pad)
    wr2 = pad_w(params["conv2_lin_r_w"], h_pad, h_pad)
    bl2 = pad_b(params["conv2_lin_l_b"], h_pad)
    wlin = pad_w(params["lin_w"], h_pad, o_pad)
    blin = pad_b(params["lin_b"], o_pad)

    # --- tile selection: decoupled row tile (tile_m) and reduction tile (tile_k)
    tm_cap = 512
    if n_pad >= 256:
        tm_cap = min(tm_cap, n_pad // 2)   # keep >= 2 row tiles (v7x megacore)
    tile_m = _largest_tile(n_pad, tm_cap)

    d_in = max(f_pad, h_pad)
    d_out = max(h_pad, o_pad)

    def footprint(tm, tk):                 # conservative double-buffered bytes
        return (2 * tm * tk                # int8 A tiles
                + tm * tk * 2              # in-kernel bf16 copy of the A tile
                + 2 * tk * d_in * 2        # neighbour-feature tiles (bf16)
                + 2 * tm * d_in * 2        # self-feature tiles (bf16)
                + 2 * tm * d_out * 4       # output tiles (f32 worst case)
                + tm * d_in * 4            # f32 accumulator scratch
                + 4 * d_in * d_out * 2)    # resident weights

    tk_cap = 2048                          # large K tiles amortize step overhead
    while tk_cap > LANE and footprint(tile_m, tk_cap) > 12 * 1024 * 1024:
        tk_cap -= LANE                     # stay under v5e's default scoped VMEM
    tile_k = _largest_tile(n_pad, tk_cap)

    grid = (n_pad // tile_m, n_pad // tile_k)
    compiler_params = pltpu.CompilerParams(
        dimension_semantics=("parallel", "arbitrary"))

    # ---------------- layer 1 ----------------
    flops1 = 2 * n_pad * n_pad * f_pad + 4 * n_pad * f_pad * h_pad
    bytes1 = (n_pad * n_pad                       # int8 A
              + 2 * (2 * n_pad * f_pad + n_pad * h_pad + 2 * f_pad * h_pad)
              + 4 * n_pad)
    h1 = pl.pallas_call(
        _sage1_kernel,
        out_shape=jax.ShapeDtypeStruct((n_pad, h_pad), jnp.bfloat16),
        grid_spec=pltpu.PrefetchScalarGridSpec(
            num_scalar_prefetch=0,
            grid=grid,
            in_specs=[
                pl.BlockSpec((tile_m, tile_k), lambda i, k: (i, k)),   # A (int8)
                pl.BlockSpec((tile_k, f_pad), lambda i, k: (k, 0)),    # x (agg rows)
                pl.BlockSpec((tile_m, f_pad), lambda i, k: (i, 0)),    # x (self rows)
                pl.BlockSpec((tile_m, 1), lambda i, k: (i, 0)),        # 1/deg (f32)
                pl.BlockSpec((f_pad, h_pad), lambda i, k: (0, 0)),     # Wl1 (resident)
                pl.BlockSpec((f_pad, h_pad), lambda i, k: (0, 0)),     # Wr1 (resident)
                pl.BlockSpec((1, h_pad), lambda i, k: (0, 0)),         # bl1 (resident)
            ],
            out_specs=pl.BlockSpec((tile_m, h_pad), lambda i, k: (i, 0)),
            scratch_shapes=[pltpu.VMEM((tile_m, f_pad), jnp.float32)],
        ),
        compiler_params=compiler_params,
        cost_estimate=pl.CostEstimate(flops=flops1, transcendentals=0,
                                      bytes_accessed=bytes1),
    )(a_p, x_p, x_p, inv_deg, wl1, wr1, bl1)

    # ---------------- layer 2 + final Linear ----------------
    flops2 = (2 * n_pad * n_pad * h_pad + 4 * n_pad * h_pad * h_pad
              + 2 * n_pad * h_pad * o_pad)
    bytes2 = (n_pad * n_pad
              + 2 * (2 * n_pad * h_pad + 2 * h_pad * h_pad + h_pad * o_pad)
              + 4 * n_pad * o_pad + 4 * n_pad)
    out_p = pl.pallas_call(
        _sage2_lin_kernel,
        out_shape=jax.ShapeDtypeStruct((n_pad, o_pad), jnp.float32),
        grid_spec=pltpu.PrefetchScalarGridSpec(
            num_scalar_prefetch=0,
            grid=grid,
            in_specs=[
                pl.BlockSpec((tile_m, tile_k), lambda i, k: (i, k)),   # A (int8)
                pl.BlockSpec((tile_k, h_pad), lambda i, k: (k, 0)),    # h1 (agg rows)
                pl.BlockSpec((tile_m, h_pad), lambda i, k: (i, 0)),    # h1 (self rows)
                pl.BlockSpec((tile_m, 1), lambda i, k: (i, 0)),        # 1/deg (f32)
                pl.BlockSpec((h_pad, h_pad), lambda i, k: (0, 0)),     # Wl2
                pl.BlockSpec((h_pad, h_pad), lambda i, k: (0, 0)),     # Wr2
                pl.BlockSpec((1, h_pad), lambda i, k: (0, 0)),         # bl2
                pl.BlockSpec((h_pad, o_pad), lambda i, k: (0, 0)),     # Wlin
                pl.BlockSpec((1, o_pad), lambda i, k: (0, 0)),         # blin
            ],
            out_specs=pl.BlockSpec((tile_m, o_pad), lambda i, k: (i, 0)),
            scratch_shapes=[pltpu.VMEM((tile_m, h_pad), jnp.float32)],
        ),
        compiler_params=compiler_params,
        cost_estimate=pl.CostEstimate(flops=flops2, transcendentals=0,
                                      bytes_accessed=bytes2),
    )(a_p, h1, h1, inv_deg, wl2, wr2, bl2, wlin, blin)

    return out_p[:N, :out_ch]


# -----------------------------------------------------------------------------
# References (pure JAX)
# -----------------------------------------------------------------------------
def _adj_and_inv(x, edge_index):
    N = x.shape[0]
    src, dst = edge_index[0], edge_index[1]
    adj = jnp.zeros((N, N), jnp.float32).at[dst, src].add(1.0)
    deg = jnp.sum(adj, axis=1, keepdims=True)
    inv = jnp.where(deg > 0, 1.0 / deg, 0.0)
    return adj, inv


def _reference_f32(x, edge_index, params):
    adj, inv = _adj_and_inv(x, edge_index)
    a = adj * inv
    h = a @ x @ params["conv1_lin_l_w"].T + params["conv1_lin_l_b"] \
        + x @ params["conv1_lin_r_w"].T
    h = jnp.maximum(h, 0.0)
    h2 = a @ h @ params["conv2_lin_l_w"].T + params["conv2_lin_l_b"] \
        + h @ params["conv2_lin_r_w"].T
    h2 = jnp.maximum(h2, 0.0)
    return h2 @ params["lin_w"].T + params["lin_b"]


def _reference_bf16(x, edge_index, params):
    """Mirrors the kernel: exact int counts, f32 accumulation, f32 1/deg scale,
    bf16 matmul operands."""
    adj, inv = _adj_and_inv(x, edge_index)
    b = lambda v: v.astype(jnp.bfloat16).astype(jnp.float32)
    xb = b(x)
    agg1 = b((adj @ xb) * inv)
    h1 = jnp.maximum(agg1 @ b(params["conv1_lin_l_w"].T) + params["conv1_lin_l_b"]
                     + xb @ b(params["conv1_lin_r_w"].T), 0.0)
    h1 = b(h1)
    agg2 = b((adj @ h1) * inv)
    h2 = jnp.maximum(agg2 @ b(params["conv2_lin_l_w"].T) + params["conv2_lin_l_b"]
                     + h1 @ b(params["conv2_lin_r_w"].T), 0.0)
    h2 = b(h2)
    return h2 @ b(params["lin_w"].T) + params["lin_b"]


# -----------------------------------------------------------------------------
if __name__ == "__main__":
    key = jax.random.PRNGKey(0)
    N, E = 64, 256            # nodes, edges
    F_in, hidden, out_ch = 16, 32, 16

    keys = jax.random.split(key, 12)
    x = jax.random.normal(keys[0], (N, F_in), jnp.float32)
    src = jax.random.randint(keys[1], (E,), 0, N, jnp.int32)
    dst = jax.random.randint(keys[2], (E,), 0, N, jnp.int32)
    edge_index = jnp.stack([src, dst], axis=0)

    def init_w(k, shape):
        fan_in = shape[1]
        return jax.random.uniform(k, shape, jnp.float32,
                                  -1.0 / jnp.sqrt(fan_in), 1.0 / jnp.sqrt(fan_in))

    params = {
        # SAGEConv(-1 -> hidden): lin_l (with bias), lin_r (no bias)
        "conv1_lin_l_w": init_w(keys[3], (hidden, F_in)),
        "conv1_lin_l_b": jax.random.uniform(keys[4], (hidden,), jnp.float32, -0.1, 0.1),
        "conv1_lin_r_w": init_w(keys[5], (hidden, F_in)),
        # SAGEConv(hidden -> hidden)
        "conv2_lin_l_w": init_w(keys[6], (hidden, hidden)),
        "conv2_lin_l_b": jax.random.uniform(keys[7], (hidden,), jnp.float32, -0.1, 0.1),
        "conv2_lin_r_w": init_w(keys[8], (hidden, hidden)),
        # Linear(hidden -> out_channels)
        "lin_w": init_w(keys[9], (out_ch, hidden)),
        "lin_b": jax.random.uniform(keys[10], (out_ch,), jnp.float32, -0.1, 0.1),
    }

    out = item_gnn_encoder(x, edge_index, params)
    out = jax.block_until_ready(out)
    assert out.shape == (N, out_ch)

    # Tight check vs a reference that mimics the kernel's bf16 operand casts,
    # loose check vs the pure-f32 reference (bf16 matmul operands -> ~1% rel).
    ref_bf16 = _reference_bf16(x, edge_index, params)
    ref_f32 = _reference_f32(x, edge_index, params)
    assert jnp.allclose(out, ref_bf16, atol=1e-2, rtol=1e-2)
    assert jnp.allclose(out, ref_f32, atol=1e-1, rtol=1e-1)

    print("KERNEL_OK")
</pallas_src>

<mosaic_0001>
module attributes {stable_mosaic.version = 11 : i64} {
  func.func @_sage1_kernel(%arg0: i32, %arg1: i32, %arg2: memref<128x128xi8, #tpu.memory_space<vmem>>, %arg3: memref<128x128xbf16, #tpu.memory_space<vmem>>, %arg4: memref<128x128xbf16, #tpu.memory_space<vmem>>, %arg5: memref<128x1xf32, #tpu.memory_space<vmem>>, %arg6: memref<128x128xbf16, #tpu.memory_space<vmem>>, %arg7: memref<128x128xbf16, #tpu.memory_space<vmem>>, %arg8: memref<1x128xf32, #tpu.memory_space<vmem>>, %arg9: memref<128x128xbf16, #tpu.memory_space<vmem>>, %arg10: memref<128x128xf32, #tpu.memory_space<vmem>>) attributes {dimension_semantics = [#tpu.dimension_semantics<parallel>, #tpu.dimension_semantics<arbitrary>], iteration_bounds = array<i64: 1, 1>, scalar_prefetch = 0 : i64, scratch_operands = 1 : i64, tpu.core_type = #tpu.core_type<tc>, window_params = [{transform_indices = @transform_0, window_bounds = array<i64: 128, 128>}, {transform_indices = @transform_1, window_bounds = array<i64: 128, 128>}, {transform_indices = @transform_2, window_bounds = array<i64: 128, 128>}, {transform_indices = @transform_3, window_bounds = array<i64: 128, 1>}, {pipeline_mode = #tpu.pipeline_mode<synchronous>, transform_indices = @transform_4, window_bounds = array<i64: 128, 128>}, {pipeline_mode = #tpu.pipeline_mode<synchronous>, transform_indices = @transform_5, window_bounds = array<i64: 128, 128>}, {pipeline_mode = #tpu.pipeline_mode<synchronous>, transform_indices = @transform_6, window_bounds = array<i64: 1, 128>}, {transform_indices = @transform_7, window_bounds = array<i64: 128, 128>}]} {
    %c0_i32 = arith.constant 0 : i32
    %0 = arith.cmpi eq, %arg1, %c0_i32 : i32
    %1 = arith.extui %0 : i1 to i32
    %c0_i32_0 = arith.constant 0 : i32
    %2 = arith.cmpi ne, %1, %c0_i32_0 : i32
    scf.if %2 {
      %cst_10 = arith.constant 0.000000e+00 : f32
      %13 = vector.broadcast %cst_10 : f32 to vector<128x128xf32>
      %c0_11 = arith.constant 0 : index
      %c0_12 = arith.constant 0 : index
      %14 = vector.load %arg10[%c0_11, %c0_12] : memref<128x128xf32, #tpu.memory_space<vmem>>, vector<128x128xf32>
      tpu.vector_store %arg10[%c0_11, %c0_12], %13 {strides = array<i32>} : memref<128x128xf32, #tpu.memory_space<vmem>>, vector<128x128xf32>,
    } else {
    }
    %c0 = arith.constant 0 : index
    %c0_1 = arith.constant 0 : index
    %3 = vector.load %arg2[%c0, %c0_1] : memref<128x128xi8, #tpu.memory_space<vmem>>, vector<128x128xi8>
    %4 = arith.sitofp %3 : vector<128x128xi8> to vector<128x128xbf16>
    %c0_2 = arith.constant 0 : index
    %c0_3 = arith.constant 0 : index
    %5 = vector.load %arg10[%c0_2, %c0_3] : memref<128x128xf32, #tpu.memory_space<vmem>>, vector<128x128xf32>
    %c0_4 = arith.constant 0 : index
    %c0_5 = arith.constant 0 : index
    %6 = vector.load %arg3[%c0_4, %c0_5] : memref<128x128xbf16, #tpu.memory_space<vmem>>, vector<128x128xbf16>
    %cst = arith.constant dense<0.000000e+00> : vector<128x128xf32>
    %7 = tpu.matmul %4, %6, %cst {dimension_numbers = #tpu.dot_dimension_numbers<[1], [0], [0], [1], [0, 0, 1, 1], [], []>} : vector<128x128xbf16>, vector<128x128xbf16>, vector<128x128xf32> -> vector<128x128xf32>
    %8 = arith.addf %5, %7 : vector<128x128xf32>
    %c0_6 = arith.constant 0 : index
    %c0_7 = arith.constant 0 : index
    %9 = vector.load %arg10[%c0_6, %c0_7] : memref<128x128xf32, #tpu.memory_space<vmem>>, vector<128x128xf32>
    tpu.vector_store %arg10[%c0_6, %c0_7], %8 {strides = array<i32>} : memref<128x128xf32, #tpu.memory_space<vmem>>, vector<128x128xf32>,
    %c0_i32_8 = arith.constant 0 : i32
    %10 = arith.cmpi eq, %arg1, %c0_i32_8 : i32
    %11 = arith.extui %10 : i1 to i32
    %c0_i32_9 = arith.constant 0 : i32
    %12 = arith.cmpi ne, %11, %c0_i32_9 : i32
    scf.if %12 {
      %c0_10 = arith.constant 0 : index
      %c0_11 = arith.constant 0 : index
      %13 = vector.load %arg10[%c0_10, %c0_11] : memref<128x128xf32, #tpu.memory_space<vmem>>, vector<128x128xf32>
      %c0_12 = arith.constant 0 : index
      %c0_13 = arith.constant 0 : index
      %14 = vector.load %arg5[%c0_12, %c0_13] : memref<128x1xf32, #tpu.memory_space<vmem>>, vector<128x1xf32>
      %15 = vector.broadcast %14 : vector<128x1xf32> to vector<128x128xf32>
      %16 = arith.mulf %13, %15 : vector<128x128xf32>
      %17 = arith.truncf %16 : vector<128x128xf32> to vector<128x128xbf16>
      %c0_14 = arith.constant 0 : index
      %c0_15 = arith.constant 0 : index
      %18 = vector.load %arg6[%c0_14, %c0_15] : memref<128x128xbf16, #tpu.memory_space<vmem>>, vector<128x128xbf16>
      %cst_16 = arith.constant dense<0.000000e+00> : vector<128x128xf32>
      %19 = tpu.matmul %17, %18, %cst_16 {dimension_numbers = #tpu.dot_dimension_numbers<[1], [0], [0], [1], [0, 0, 1, 1], [], []>} : vector<128x128xbf16>, vector<128x128xbf16>, vector<128x128xf32> -> vector<128x128xf32>
      %c0_17 = arith.constant 0 : index
      %c0_18 = arith.constant 0 : index
      %20 = vector.load %arg8[%c0_17, %c0_18] : memref<1x128xf32, #tpu.memory_space<vmem>>, vector<1x128xf32>
      %21 = vector.broadcast %20 : vector<1x128xf32> to vector<128x128xf32>
      %22 = arith.addf %19, %21 : vector<128x128xf32>
      %c0_19 = arith.constant 0 : index
      %c0_20 = arith.constant 0 : index
      %23 = vector.load %arg4[%c0_19, %c0_20] : memref<128x128xbf16, #tpu.memory_space<vmem>>, vector<128x128xbf16>
      %c0_21 = arith.constant 0 : index
      %c0_22 = arith.constant 0 : index
      %24 = vector.load %arg7[%c0_21, %c0_22] : memref<128x128xbf16, #tpu.memory_space<vmem>>, vector<128x128xbf16>
      %cst_23 = arith.constant dense<0.000000e+00> : vector<128x128xf32>
      %25 = tpu.matmul %23, %24, %cst_23 {dimension_numbers = #tpu.dot_dimension_numbers<[1], [0], [0], [1], [0, 0, 1, 1], [], []>} : vector<128x128xbf16>, vector<128x128xbf16>, vector<128x128xf32> -> vector<128x128xf32>
      %26 = arith.addf %22, %25 : vector<128x128xf32>
      %cst_24 = arith.constant 0.000000e+00 : f32
      %27 = vector.broadcast %cst_24 : f32 to vector<128x128xf32>
      %28 = arith.maximumf %26, %27 : vector<128x128xf32>
      %29 = arith.truncf %28 : vector<128x128xf32> to vector<128x128xbf16>
      %c0_25 = arith.constant 0 : index
      %c0_26 = arith.constant 0 : index
      %30 = vector.load %arg9[%c0_25, %c0_26] : memref<128x128xbf16, #tpu.memory_space<vmem>>, vector<128x128xbf16>
      tpu.vector_store %arg9[%c0_25, %c0_26], %29 {strides = array<i32>} : memref<128x128xbf16, #tpu.memory_space<vmem>>, vector<128x128xbf16>,
    } else {
    }
    return
  }
  func.func @transform_0(%arg0: i32, %arg1: i32) -> (i32, i32) {
    %c0_i32 = arith.constant 0 : i32
    return %arg0, %arg1 : i32, i32
  }
  func.func @transform_1(%arg0: i32, %arg1: i32) -> (i32, i32) {
    %c0_i32 = arith.constant 0 : i32
    %c0_i32_0 = arith.constant 0 : i32
    return %arg1, %c0_i32 : i32, i32
  }
  func.func @transform_2(%arg0: i32, %arg1: i32) -> (i32, i32) {
    %c0_i32 = arith.constant 0 : i32
    %c0_i32_0 = arith.constant 0 : i32
    return %arg0, %c0_i32 : i32, i32
  }
  func.func @transform_3(%arg0: i32, %arg1: i32) -> (i32, i32) {
    %c0_i32 = arith.constant 0 : i32
    %c0_i32_0 = arith.constant 0 : i32
    return %arg0, %c0_i32 : i32, i32
  }
  func.func @transform_4(%arg0: i32, %arg1: i32) -> (i32, i32) {
    %c0_i32 = arith.constant 0 : i32
    %c0_i32_0 = arith.constant 0 : i32
    %c0_i32_1 = arith.constant 0 : i32
    return %c0_i32, %c0_i32_0 : i32, i32
  }
  func.func @transform_5(%arg0: i32, %arg1: i32) -> (i32, i32) {
    %c0_i32 = arith.constant 0 : i32
    %c0_i32_0 = arith.constant 0 : i32
    %c0_i32_1 = arith.constant 0 : i32
    return %c0_i32, %c0_i32_0 : i32, i32
  }
  func.func @transform_6(%arg0: i32, %arg1: i32) -> (i32, i32) {
    %c0_i32 = arith.constant 0 : i32
    %c0_i32_0 = arith.constant 0 : i32
    %c0_i32_1 = arith.constant 0 : i32
    return %c0_i32, %c0_i32_0 : i32, i32
  }
  func.func @transform_7(%arg0: i32, %arg1: i32) -> (i32, i32) {
    %c0_i32 = arith.constant 0 : i32
    %c0_i32_0 = arith.constant 0 : i32
    return %arg0, %c0_i32 : i32, i32
  }
}

</mosaic_0001>

<llo_original>
// kernel: tpu_custom_call.1
$region0: #{tpu_custom_call.1}
  #allocation0 [shape = 'u32[]', space=smem, size = 0x4, offset = 0x4, fixed_abs, tag = 'smem constant byte address 0x4 - core index']
  #allocation1 [shape = 'u32[144,128]{1,0:T(1,128)}', space=vmem, size = 0x12000, scoped, tag = 'internal scratch']
  #allocation2 [shape = 'f32[128,128]{1,0:T(8,128)}', space=vmem, size = 0x10000, scoped, tag = 'scratch operand']
  %s0 = inlined_call_operand.hbm [shape: s8[128,128], index: 0, kind: input, shape index: {}]
  %s1 = inlined_call_operand.vmem [shape: bf16[128,128], index: 1, kind: input, shape index: {}]
  %s2 = inlined_call_operand.vmem [shape: bf16[128,128], index: 2, kind: input, shape index: {}]
  %s3 = inlined_call_operand.vmem [shape: f32[128,1], index: 3, kind: input, shape index: {}]
  %s4 = inlined_call_operand.hbm [shape: bf16[128,128], index: 4, kind: input, shape index: {}]
  %s5 = inlined_call_operand.hbm [shape: bf16[128,128], index: 5, kind: input, shape index: {}]
  %s6 = inlined_call_operand.vmem [shape: f32[1,128], index: 6, kind: input, shape index: {}]
  %s7 = inlined_call_operand.hbm [shape: bf16[128,128], index: 7, kind: output, shape index: {}]
  %s8 = sld [smem:[#allocation0]]
  $region58: #{tpu_custom_call.1} parent=0
    _
  %s10 = ssub.s32 1, %s8
  %s11 = scalar_select 0, %s10, %s8
  $region1: #{tpu_custom_call.1} parent=0
    #allocation3 [shape = 'u8[16384]{0}', space=vmem, size = 0x4000, scoped, tag = 'input window, operand 0, single buffered']
    #allocation4 [shape = 's32[1]{0}', space=sflag, size = 0x4, scoped, tag = 'scoped memory for tpu_custom_call.1']
    #allocation5 [shape = 's32[1]{0}', space=sflag, size = 0x4, scoped, tag = 'scoped memory for tpu_custom_call.1']
    #allocation6 [shape = 'u8[32768]{0}', space=vmem, size = 0x8000, scoped, tag = 'input window, operand 4, single buffered']
    #allocation7 [shape = 's32[1]{0}', space=sflag, size = 0x4, scoped, tag = 'scoped memory for tpu_custom_call.1']
    #allocation8 [shape = 'u8[32768]{0}', space=vmem, size = 0x8000, scoped, tag = 'input window, operand 5, single buffered']
    #allocation9 [shape = 'u8[32768]{0}', space=vmem, size = 0x8000, scoped, tag = 'output window, operand 0, single buffered']
    %12 = vsyncpa [#allocation4], 0
    %13 = vsyncpa [#allocation7], 0
    %14 = vsyncpa [#allocation5], 0
    // Predicated region
    $region2: #{tpu_custom_call.1} parent=1 // pred_check
      _
    $region3: #{tpu_custom_call.1} parent=1 // pred_check_branch
      %16 = sbr.rel (0) target = $region5
    $region4: #{tpu_custom_call.1} parent=1 // pred_region
      %s18 = ssub.s32 512, 512
      %19 = vsyncadd [#allocation4], %s18
      %s20 = sshll.u32 [#allocation3], 4
      %s21 = int_to_ptr.vmem [resolvable:$true] %s20
      %26 = dma.hbm_to_vmem [thread:$0]  %s0, 512, %s21, [#allocation4], 128, 128, 8
    $region5: #{tpu_custom_call.1} parent=1 // pred_fallthru
      _
    // Predicated region
    $region6: #{tpu_custom_call.1} parent=1 // pred_check
      _
    $region7: #{tpu_custom_call.1} parent=1 // pred_check_branch
      %28 = sbr.rel (0) target = $region9
    $region8: #{tpu_custom_call.1} parent=1 // pred_region
      _
    $region9: #{tpu_custom_call.1} parent=1 // pred_fallthru
      _
    // Predicated region
    $region10: #{tpu_custom_call.1} parent=1 // pred_check
      _
    $region11: #{tpu_custom_call.1} parent=1 // pred_check_branch
      %30 = sbr.rel (0) target = $region13
    $region12: #{tpu_custom_call.1} parent=1 // pred_region
      _
    $region13: #{tpu_custom_call.1} parent=1 // pred_fallthru
      _
    // Predicated region
    $region14: #{tpu_custom_call.1} parent=1 // pred_check
      _
    $region15: #{tpu_custom_call.1} parent=1 // pred_check_branch
      %32 = sbr.rel (0) target = $region17
    $region16: #{tpu_custom_call.1} parent=1 // pred_region
      _
    $region17: #{tpu_custom_call.1} parent=1 // pred_fallthru
      _
    // Predicated region
    $region18: #{tpu_custom_call.1} parent=1 // pred_check
      _
    $region19: #{tpu_custom_call.1} parent=1 // pred_check_branch
      %34 = sbr.rel (0) target = $region21
    $region20: #{tpu_custom_call.1} parent=1 // pred_region
      %s36 = ssub.s32 1024, 1024
      %37 = vsyncadd [#allocation7], %s36
      %s38 = sshll.u32 [#allocation6], 4
      %s39 = int_to_ptr.vmem [resolvable:$true] %s38
      %44 = dma.hbm_to_vmem [thread:$0]  %s4, 1024, %s39, [#allocation7], 64, 64, 4
    $region21: #{tpu_custom_call.1} parent=1 // pred_fallthru
      _
    // Predicated region
    $region22: #{tpu_custom_call.1} parent=1 // pred_check
      _
    $region23: #{tpu_custom_call.1} parent=1 // pred_check_branch
      %46 = sbr.rel (0) target = $region25
    $region24: #{tpu_custom_call.1} parent=1 // pred_region
      %s48 = ssub.s32 1024, 1024
      %49 = vsyncadd [#allocation7], %s48
      %s50 = sshll.u32 [#allocation8], 4
      %s51 = int_to_ptr.vmem [resolvable:$true] %s50
      %56 = dma.hbm_to_vmem [thread:$0]  %s5, 1024, %s51, [#allocation7], 64, 64, 4
    $region25: #{tpu_custom_call.1} parent=1 // pred_fallthru
      _
    // Predicated region
    $region26: #{tpu_custom_call.1} parent=1 // pred_check
      _
    $region27: #{tpu_custom_call.1} parent=1 // pred_check_branch
      %58 = sbr.rel (0) target = $region29
    $region28: #{tpu_custom_call.1} parent=1 // pred_region
      _
    $region29: #{tpu_custom_call.1} parent=1 // pred_fallthru
      _
    // Predicated region
    $region30: #{tpu_custom_call.1} parent=1 // pred_check
      _
    $region31: #{tpu_custom_call.1} parent=1 // pred_check_branch
      %60 = sbr.rel (0) target = $region33
    $region32: #{tpu_custom_call.1} parent=1 // pred_region
      %61 = dma.done [#allocation4], 512
    $region33: #{tpu_custom_call.1} parent=1 // pred_fallthru
      _
    // Predicated region
    $region34: #{tpu_custom_call.1} parent=1 // pred_check
      _
    $region35: #{tpu_custom_call.1} parent=1 // pred_check_branch
      %63 = sbr.rel (0) target = $region37
    $region36: #{tpu_custom_call.1} parent=1 // pred_region
      %64 = dma.done [#allocation7], 1024
    $region37: #{tpu_custom_call.1} parent=1 // pred_fallthru
      _
    // Predicated region
    $region38: #{tpu_custom_call.1} parent=1 // pred_check
      _
    $region39: #{tpu_custom_call.1} parent=1 // pred_check_branch
      %66 = sbr.rel (0) target = $region41
    $region40: #{tpu_custom_call.1} parent=1 // pred_region
      %67 = dma.done [#allocation7], 1024
    $region41: #{tpu_custom_call.1} parent=1 // pred_fallthru
      _
    %p69 = scmp.eq.s32.totalorder 0, 0
    // Predicated region
    $region42: #{tpu_custom_call.1} parent=1 // pred_check
      %p70 = pneg %p69
    $region43: #{tpu_custom_call.1} parent=1 // pred_check_branch
      %72 = sbr.rel (%p70) target = $region45
    $region44: #{tpu_custom_call.1} parent=1 // pred_region
      %73 = vst [vmem:[#allocation2] sm:$0xff] 0.0
      %74 = vst [vmem:[#allocation2 + $0x8] sm:$0xff] 0.0
      %75 = vst [vmem:[#allocation2 + $0x10] sm:$0xff] 0.0
      %76 = vst [vmem:[#allocation2 + $0x18] sm:$0xff] 0.0
      %77 = vst [vmem:[#allocation2 + $0x20] sm:$0xff] 0.0
      %78 = vst [vmem:[#allocation2 + $0x28] sm:$0xff] 0.0
      %79 = vst [vmem:[#allocation2 + $0x30] sm:$0xff] 0.0
      %80 = vst [vmem:[#allocation2 + $0x38] sm:$0xff] 0.0
      %81 = vst [vmem:[#allocation2 + $0x40] sm:$0xff] 0.0
      %82 = vst [vmem:[#allocation2 + $0x48] sm:$0xff] 0.0
      %83 = vst [vmem:[#allocation2 + $0x50] sm:$0xff] 0.0
      %84 = vst [vmem:[#allocation2 + $0x58] sm:$0xff] 0.0
      %85 = vst [vmem:[#allocation2 + $0x60] sm:$0xff] 0.0
      %86 = vst [vmem:[#allocation2 + $0x68] sm:$0xff] 0.0
      %87 = vst [vmem:[#allocation2 + $0x70] sm:$0xff] 0.0
      %88 = vst [vmem:[#allocation2 + $0x78] sm:$0xff] 0.0
    $region45: #{tpu_custom_call.1} parent=1 // pred_fallthru
      _
    %v89 = vld [vmem:[#allocation3] sm:$0xff]
    %v90 = vld [vmem:[#allocation3 + $0x8] sm:$0xff]
    %v91 = vld [vmem:[#allocation3 + $0x10] sm:$0xff]
    %v92 = vld [vmem:[#allocation3 + $0x18] sm:$0xff]
    %v93 = vunpack.c.l.s8.bf16 %v89
    %v94 = vunpack.c.h.s8.bf16 %v89
    %v95 = vunpack.c.l.s8.bf16 %v90
    %v96 = vunpack.c.h.s8.bf16 %v90
    %v97 = vunpack.c.l.s8.bf16 %v91
    %v98 = vunpack.c.h.s8.bf16 %v91
    %v99 = vunpack.c.l.s8.bf16 %v92
    %v100 = vunpack.c.h.s8.bf16 %v92
    %v101 = vld [vmem:[#allocation2] sm:$0xff]
    %v102 = vld [vmem:[#allocation2 + $0x8] sm:$0xff]
    %v103 = vld [vmem:[#allocation2 + $0x10] sm:$0xff]
    %v104 = vld [vmem:[#allocation2 + $0x18] sm:$0xff]
    %v105 = vld [vmem:[#allocation2 + $0x20] sm:$0xff]
    %v106 = vld [vmem:[#allocation2 + $0x28] sm:$0xff]
    %v107 = vld [vmem:[#allocation2 + $0x30] sm:$0xff]
    %v108 = vld [vmem:[#allocation2 + $0x38] sm:$0xff]
    %v109 = vld [vmem:[#allocation2 + $0x40] sm:$0xff]
    %v110 = vld [vmem:[#allocation2 + $0x48] sm:$0xff]
    %v111 = vld [vmem:[#allocation2 + $0x50] sm:$0xff]
    %v112 = vld [vmem:[#allocation2 + $0x58] sm:$0xff]
    %v113 = vld [vmem:[#allocation2 + $0x60] sm:$0xff]
    %v114 = vld [vmem:[#allocation2 + $0x68] sm:$0xff]
    %v115 = vld [vmem:[#allocation2 + $0x70] sm:$0xff]
    %v116 = vld [vmem:[#allocation2 + $0x78] sm:$0xff]
    %v117 = vld [vmem:[%s1] sm:$0xf]
    %v118 = vld [vmem:[%s1 + $0x4] sm:$0xf]
    %v119 = vld [vmem:[%s1 + $0x8] sm:$0xf]
    %v120 = vld [vmem:[%s1 + $0xc] sm:$0xf]
    %v121 = vld [vmem:[%s1 + $0x10] sm:$0xf]
    %v122 = vld [vmem:[%s1 + $0x14] sm:$0xf]
    %v123 = vld [vmem:[%s1 + $0x18] sm:$0xf]
    %v124 = vld [vmem:[%s1 + $0x1c] sm:$0xf]
    %v125 = vld [vmem:[%s1 + $0x20] sm:$0xf]
    %v126 = vld [vmem:[%s1 + $0x24] sm:$0xf]
    %v127 = vld [vmem:[%s1 + $0x28] sm:$0xf]
    %v128 = vld [vmem:[%s1 + $0x2c] sm:$0xf]
    %v129 = vld [vmem:[%s1 + $0x30] sm:$0xf]
    %v130 = vld [vmem:[%s1 + $0x34] sm:$0xf]
    %v131 = vld [vmem:[%s1 + $0x38] sm:$0xf]
    %v132 = vld [vmem:[%s1 + $0x3c] sm:$0xf]
    %v149 = vunpack.c.l.b16 %v117
    %v150 = vunpack.c.l.b16 %v118
    %v151 = vunpack.c.l.b16 %v119
    %v152 = vunpack.c.l.b16 %v120
    %v153 = vunpack.c.l.b16 %v121
    %v154 = vunpack.c.l.b16 %v122
    %v155 = vunpack.c.l.b16 %v123
    %v156 = vunpack.c.l.b16 %v124
    %v157 = vunpack.c.l.b16 %v125
    %v158 = vunpack.c.l.b16 %v126
    %v159 = vunpack.c.l.b16 %v127
    %v160 = vunpack.c.l.b16 %v128
    %v161 = vunpack.c.l.b16 %v129
    %v162 = vunpack.c.l.b16 %v130
    %v163 = vunpack.c.l.b16 %v131
    %v164 = vunpack.c.l.b16 %v132
    %v165 = vpack.c.b16 %v150, %v149
    %v166 = vpack.c.b16 %v152, %v151
    %v167 = vpack.c.b16 %v154, %v153
    %v168 = vpack.c.b16 %v156, %v155
    %v169 = vpack.c.b16 %v158, %v157
    %v170 = vpack.c.b16 %v160, %v159
    %v171 = vpack.c.b16 %v162, %v161
    %v172 = vpack.c.b16 %v164, %v163
    %181 = vmatprep.subr.bf16.mxu0 0
    %182 = vmatpush1.bf16.msra.mxu0 %v165
    %183 = vmatprep.subr.bf16.mxu0 0
    %184 = vmatpush1.bf16.msra.mxu0 %v166
    %185 = vmatprep.subr.bf16.mxu0 0
    %186 = vmatpush1.bf16.msra.mxu0 %v167
    %187 = vmatprep.subr.bf16.mxu0 0
    %188 = vmatpush1.bf16.msra.mxu0 %v168
    %189 = vmatprep.subr.bf16.mxu0 0
    %190 = vmatpush1.bf16.msra.mxu0 %v169
    %191 = vmatprep.subr.bf16.mxu0 0
    %192 = vmatpush1.bf16.msra.mxu0 %v170
    %193 = vmatprep.subr.bf16.mxu0 0
    %194 = vmatpush1.bf16.msra.mxu0 %v171
    %195 = vmatprep.subr.bf16.mxu0 0
    %196 = vmatpush1.bf16.msra.mxu0 %v172
    %197 = vmatprep.subr.bf16.mxu0 0
    %198 = vmatpush1.bf16.msra.mxu0 0
    %199 = vmatprep.subr.bf16.mxu0 0
    %200 = vmatpush1.bf16.msra.mxu0 0
    %201 = vmatprep.subr.bf16.mxu0 0
    %202 = vmatpush1.bf16.msra.mxu0 0
    %203 = vmatprep.subr.bf16.mxu0 0
    %204 = vmatpush1.bf16.msra.mxu0 0
    %205 = vmatprep.subr.bf16.mxu0 0
    %206 = vmatpush1.bf16.msra.mxu0 0
    %207 = vmatprep.subr.bf16.mxu0 0
    %208 = vmatpush1.bf16.msra.mxu0 0
    %209 = vmatprep.subr.bf16.mxu0 0
    %210 = vmatpush1.bf16.msra.mxu0 0
    %211 = vmatprep.subr.bf16.mxu0 0
    %212 = vmatpush1.bf16.msra.mxu0 0
    %213 = vmatprep.mubr.bf16.mxu0 0
    %214 = vmatmul.mubr.bf16.gmra.mrb[0].mxu0 %v93
    %v215 = vpop.f32.mrb[0].mxu0
    %v216 = vadd.f32 0.0, %v215
    %v217 = vpop.f32.mrb[0].mxu0
    %v218 = vpop.f32.mrb[0].mxu0
    %v219 = vadd.f32 0.0, %v218
    %v220 = vpop.f32.mrb[0].mxu0
    %221 = vmatprep.mubr.bf16.mxu0 0
    %222 = vmatmul.mubr.bf16.gmra.mrb[0].mxu0 %v94
    %v223 = vpop.f32.mrb[0].mxu0
    %v224 = vadd.f32 0.0, %v223
    %v225 = vpop.f32.mrb[0].mxu0
    %v226 = vpop.f32.mrb[0].mxu0
    %v227 = vadd.f32 0.0, %v226
    %v228 = vpop.f32.mrb[0].mxu0
    %229 = vmatprep.mubr.bf16.mxu0 0
    %230 = vmatmul.mubr.bf16.gmra.mrb[0].mxu0 %v95
    %v231 = vpop.f32.mrb[0].mxu0
    %v232 = vadd.f32 0.0, %v231
    %v233 = vpop.f32.mrb[0].mxu0
    %v234 = vpop.f32.mrb[0].mxu0
    %v235 = vadd.f32 0.0, %v234
    %v236 = vpop.f32.mrb[0].mxu0
    %237 = vmatprep.mubr.bf16.mxu0 0
    %238 = vmatmul.mubr.bf16.gmra.mrb[0].mxu0 %v96
    %v239 = vpop.f32.mrb[0].mxu0
    %v240 = vadd.f32 0.0, %v239
    %v241 = vpop.f32.mrb[0].mxu0
    %v242 = vpop.f32.mrb[0].mxu0
    %v243 = vadd.f32 0.0, %v242
    %v244 = vpop.f32.mrb[0].mxu0
    %245 = vmatprep.mubr.bf16.mxu0 0
    %246 = vmatmul.mubr.bf16.gmra.mrb[0].mxu0 %v97
    %v247 = vpop.f32.mrb[0].mxu0
    %v248 = vadd.f32 0.0, %v247
    %v249 = vpop.f32.mrb[0].mxu0
    %v250 = vpop.f32.mrb[0].mxu0
    %v251 = vadd.f32 0.0, %v250
    %v252 = vpop.f32.mrb[0].mxu0
    %253 = vmatprep.mubr.bf16.mxu0 0
    %254 = vmatmul.mubr.bf16.gmra.mrb[0].mxu0 %v98
    %v255 = vpop.f32.mrb[0].mxu0
    %v256 = vadd.f32 0.0, %v255
    %v257 = vpop.f32.mrb[0].mxu0
    %v258 = vpop.f32.mrb[0].mxu0
    %v259 = vadd.f32 0.0, %v258
    %v260 = vpop.f32.mrb[0].mxu0
    %261 = vmatprep.mubr.bf16.mxu0 0
    %262 = vmatmul.mubr.bf16.gmra.mrb[0].mxu0 %v99
    %v263 = vpop.f32.mrb[0].mxu0
    %v264 = vadd.f32 0.0, %v263
    %v265 = vpop.f32.mrb[0].mxu0
    %v266 = vpop.f32.mrb[0].mxu0
    %v267 = vadd.f32 0.0, %v266
    %v268 = vpop.f32.mrb[0].mxu0
    %269 = vmatprep.mubr.bf16.mxu0 0
    %270 = vmatmul.mubr.bf16.gmra.mrb[0].mxu0 %v100
    %v271 = vpop.f32.mrb[0].mxu0
    %v272 = vadd.f32 0.0, %v271
    %v273 = vpop.f32.mrb[0].mxu0
    %v274 = vpop.f32.mrb[0].mxu0
    %v275 = vadd.f32 0.0, %v274
    %v276 = vpop.f32.mrb[0].mxu0
    %277 = vdwg.mxu0
    %v278 = vadd.f32 %v101, %v216
    %v279 = vadd.f32 %v102, %v219
    %v280 = vadd.f32 %v103, %v224
    %v281 = vadd.f32 %v104, %v227
    %v282 = vadd.f32 %v105, %v232
    %v283 = vadd.f32 %v106, %v235
    %v284 = vadd.f32 %v107, %v240
    %v285 = vadd.f32 %v108, %v243
    %v286 = vadd.f32 %v109, %v248
    %v287 = vadd.f32 %v110, %v251
    %v288 = vadd.f32 %v111, %v256
    %v289 = vadd.f32 %v112, %v259
    %v290 = vadd.f32 %v113, %v264
    %v291 = vadd.f32 %v114, %v267
    %v292 = vadd.f32 %v115, %v272
    %v293 = vadd.f32 %v116, %v275
    %294 = vst [vmem:[#allocation2] sm:$0xff] %v278
    %295 = vst [vmem:[#allocation2 + $0x8] sm:$0xff] %v279
    %296 = vst [vmem:[#allocation2 + $0x10] sm:$0xff] %v280
    %297 = vst [vmem:[#allocation2 + $0x18] sm:$0xff] %v281
    %298 = vst [vmem:[#allocation2 + $0x20] sm:$0xff] %v282
    %299 = vst [vmem:[#allocation2 + $0x28] sm:$0xff] %v283
    %300 = vst [vmem:[#allocation2 + $0x30] sm:$0xff] %v284
    %301 = vst [vmem:[#allocation2 + $0x38] sm:$0xff] %v285
    %302 = vst [vmem:[#allocation2 + $0x40] sm:$0xff] %v286
    %303 = vst [vmem:[#allocation2 + $0x48] sm:$0xff] %v287
    %304 = vst [vmem:[#allocation2 + $0x50] sm:$0xff] %v288
    %305 = vst [vmem:[#allocation2 + $0x58] sm:$0xff] %v289
    %306 = vst [vmem:[#allocation2 + $0x60] sm:$0xff] %v290
    %307 = vst [vmem:[#allocation2 + $0x68] sm:$0xff] %v291
    %308 = vst [vmem:[#allocation2 + $0x70] sm:$0xff] %v292
    %309 = vst [vmem:[#allocation2 + $0x78] sm:$0xff] %v293
    // Predicated region
    $region46: #{tpu_custom_call.1} parent=1 // pred_check
      %p310 = pneg %p69
    $region47: #{tpu_custom_call.1} parent=1 // pred_check_branch
      %312 = sbr.rel (%p310) target = $region49
    $region48: #{tpu_custom_call.1} parent=1 // pred_region
      %v313 = vld [vmem:[#allocation2] sm:$0xff]
      %v314 = vld [vmem:[#allocation2 + $0x8] sm:$0xff]
      %v315 = vld [vmem:[#allocation2 + $0x10] sm:$0xff]
      %v316 = vld [vmem:[#allocation2 + $0x18] sm:$0xff]
      %v317 = vld [vmem:[#allocation2 + $0x20] sm:$0xff]
      %v318 = vld [vmem:[#allocation2 + $0x28] sm:$0xff]
      %v319 = vld [vmem:[#allocation2 + $0x30] sm:$0xff]
      %v320 = vld [vmem:[#allocation2 + $0x38] sm:$0xff]
      %v321 = vld [vmem:[#allocation2 + $0x40] sm:$0xff]
      %v322 = vld [vmem:[#allocation2 + $0x48] sm:$0xff]
      %v323 = vld [vmem:[#allocation2 + $0x50] sm:$0xff]
      %v324 = vld [vmem:[#allocation2 + $0x58] sm:$0xff]
      %v325 = vld [vmem:[#allocation2 + $0x60] sm:$0xff]
      %v326 = vld [vmem:[#allocation2 + $0x68] sm:$0xff]
      %v327 = vld [vmem:[#allocation2 + $0x70] sm:$0xff]
      %v328 = vld [vmem:[#allocation2 + $0x78] sm:$0xff]
      %v329 = vld [vmem:[%s3] sm:$0xff]
      %v330 = vld [vmem:[%s3 + $0x8] sm:$0xff]
      %v331 = vld [vmem:[%s3 + $0x10] sm:$0xff]
      %v332 = vld [vmem:[%s3 + $0x18] sm:$0xff]
      %v333 = vld [vmem:[%s3 + $0x20] sm:$0xff]
      %v334 = vld [vmem:[%s3 + $0x28] sm:$0xff]
      %v335 = vld [vmem:[%s3 + $0x30] sm:$0xff]
      %v336 = vld [vmem:[%s3 + $0x38] sm:$0xff]
      %v337 = vld [vmem:[%s3 + $0x40] sm:$0xff]
      %v338 = vld [vmem:[%s3 + $0x48] sm:$0xff]
      %v339 = vld [vmem:[%s3 + $0x50] sm:$0xff]
      %v340 = vld [vmem:[%s3 + $0x58] sm:$0xff]
      %v341 = vld [vmem:[%s3 + $0x60] sm:$0xff]
      %v342 = vld [vmem:[%s3 + $0x68] sm:$0xff]
      %v343 = vld [vmem:[%s3 + $0x70] sm:$0xff]
      %v344 = vld [vmem:[%s3 + $0x78] sm:$0xff]
      %346 = vset.pattern.permute.xlu0 0
      %347 = vperm.xlu0 %346, %v329
      %v348 = vpop.permute.xlu0 %347
      %351 = vset.pattern.permute.xlu0 0
      %352 = vperm.xlu0 %351, %v330
      %v353 = vpop.permute.xlu0 %352
      %356 = vset.pattern.permute.xlu0 0
      %357 = vperm.xlu0 %356, %v331
      %v358 = vpop.permute.xlu0 %357
      %361 = vset.pattern.permute.xlu0 0
      %362 = vperm.xlu0 %361, %v332
      %v363 = vpop.permute.xlu0 %362
      %366 = vset.pattern.permute.xlu0 0
      %367 = vperm.xlu0 %366, %v333
      %v368 = vpop.permute.xlu0 %367
      %371 = vset.pattern.permute.xlu0 0
      %372 = vperm.xlu0 %371, %v334
      %v373 = vpop.permute.xlu0 %372
      %376 = vset.pattern.permute.xlu0 0
      %377 = vperm.xlu0 %376, %v335
      %v378 = vpop.permute.xlu0 %377
      %381 = vset.pattern.permute.xlu0 0
      %382 = vperm.xlu0 %381, %v336
      %v383 = vpop.permute.xlu0 %382
      %386 = vset.pattern.permute.xlu0 0
      %387 = vperm.xlu0 %386, %v337
      %v388 = vpop.permute.xlu0 %387
      %391 = vset.pattern.permute.xlu0 0
      %392 = vperm.xlu0 %391, %v338
      %v393 = vpop.permute.xlu0 %392
      %396 = vset.pattern.permute.xlu0 0
      %397 = vperm.xlu0 %396, %v339
      %v398 = vpop.permute.xlu0 %397
      %401 = vset.pattern.permute.xlu0 0
      %402 = vperm.xlu0 %401, %v340
      %v403 = vpop.permute.xlu0 %402
      %406 = vset.pattern.permute.xlu0 0
      %407 = vperm.xlu0 %406, %v341
      %v408 = vpop.permute.xlu0 %407
      %411 = vset.pattern.permute.xlu0 0
      %412 = vperm.xlu0 %411, %v342
      %v413 = vpop.permute.xlu0 %412
      %416 = vset.pattern.permute.xlu0 0
      %417 = vperm.xlu0 %416, %v343
      %v418 = vpop.permute.xlu0 %417
      %421 = vset.pattern.permute.xlu0 0
      %422 = vperm.xlu0 %421, %v344
      %v423 = vpop.permute.xlu0 %422
      %v425 = vmul.f32 %v313, %v348
      %v426 = vmul.f32 %v314, %v353
      %v427 = vmul.f32 %v315, %v358
      %v428 = vmul.f32 %v316, %v363
      %v429 = vmul.f32 %v317, %v368
      %v430 = vmul.f32 %v318, %v373
      %v431 = vmul.f32 %v319, %v378
      %v432 = vmul.f32 %v320, %v383
      %v433 = vmul.f32 %v321, %v388
      %v434 = vmul.f32 %v322, %v393
      %v435 = vmul.f32 %v323, %v398
      %v436 = vmul.f32 %v324, %v403
      %v437 = vmul.f32 %v325, %v408
      %v438 = vmul.f32 %v326, %v413
      %v439 = vmul.f32 %v327, %v418
      %v440 = vmul.f32 %v328, %v423
      %v441 = vpack.c.bf16 %v426, %v425
      %v442 = vpack.c.bf16 %v428, %v427
      %v443 = vpack.c.bf16 %v430, %v429
      %v444 = vpack.c.bf16 %v432, %v431
      %v445 = vpack.c.bf16 %v434, %v433
      %v446 = vpack.c.bf16 %v436, %v435
      %v447 = vpack.c.bf16 %v438, %v437
      %v448 = vpack.c.bf16 %v440, %v439
      %v449 = vld [vmem:[#allocation6] sm:$0xf]
      %v450 = vld [vmem:[#allocation6 + $0x4] sm:$0xf]
      %v451 = vld [vmem:[#allocation6 + $0x8] sm:$0xf]
      %v452 = vld [vmem:[#allocation6 + $0xc] sm:$0xf]
      %v453 = vld [vmem:[#allocation6 + $0x10] sm:$0xf]
      %v454 = vld [vmem:[#allocation6 + $0x14] sm:$0xf]
      %v455 = vld [vmem:[#allocation6 + $0x18] sm:$0xf]
      %v456 = vld [vmem:[#allocation6 + $0x1c] sm:$0xf]
      %v457 = vld [vmem:[#allocation6 + $0x20] sm:$0xf]
      %v458 = vld [vmem:[#allocation6 + $0x24] sm:$0xf]
      %v459 = vld [vmem:[#allocation6 + $0x28] sm:$0xf]
      %v460 = vld [vmem:[#allocation6 + $0x2c] sm:$0xf]
      %v461 = vld [vmem:[#allocation6 + $0x30] sm:$0xf]
      %v462 = vld [vmem:[#allocation6 + $0x34] sm:$0xf]
      %v463 = vld [vmem:[#allocation6 + $0x38] sm:$0xf]
      %v464 = vld [vmem:[#allocation6 + $0x3c] sm:$0xf]
      %v465 = vld [vmem:[%s6] sm:$0x1]
      %v467 = vlaneseq
      %v468 = vshrl.u32 %v467, 7
      %v469 = vsub.s32 0, %v468
      %v470 = vrot.slane %v465, %v469
      %v488 = vunpack.c.l.b16 %v449
      %v489 = vunpack.c.l.b16 %v450
      %v490 = vunpack.c.l.b16 %v451
      %v491 = vunpack.c.l.b16 %v452
      %v492 = vunpack.c.l.b16 %v453
      %v493 = vunpack.c.l.b16 %v454
      %v494 = vunpack.c.l.b16 %v455
      %v495 = vunpack.c.l.b16 %v456
      %v496 = vunpack.c.l.b16 %v457
      %v497 = vunpack.c.l.b16 %v458
      %v498 = vunpack.c.l.b16 %v459
      %v499 = vunpack.c.l.b16 %v460
      %v500 = vunpack.c.l.b16 %v461
      %v501 = vunpack.c.l.b16 %v462
      %v502 = vunpack.c.l.b16 %v463
      %v503 = vunpack.c.l.b16 %v464
      %v504 = vpack.c.b16 %v489, %v488
      %v505 = vpack.c.b16 %v491, %v490
      %v506 = vpack.c.b16 %v493, %v492
      %v507 = vpack.c.b16 %v495, %v494
      %v508 = vpack.c.b16 %v497, %v496
      %v509 = vpack.c.b16 %v499, %v498
      %v510 = vpack.c.b16 %v501, %v500
      %v511 = vpack.c.b16 %v503, %v502
      %520 = vmatprep.subr.bf16.mxu0 0
      %521 = vmatpush1.bf16.msra.mxu0 %v504
      %522 = vmatprep.subr.bf16.mxu0 0
      %523 = vmatpush1.bf16.msra.mxu0 %v505
      %524 = vmatprep.subr.bf16.mxu0 0
      %525 = vmatpush1.bf16.msra.mxu0 %v506
      %526 = vmatprep.subr.bf16.mxu0 0
      %527 = vmatpush1.bf16.msra.mxu0 %v507
      %528 = vmatprep.subr.bf16.mxu0 0
      %529 = vmatpush1.bf16.msra.mxu0 %v508
      %530 = vmatprep.subr.bf16.mxu0 0
      %531 = vmatpush1.bf16.msra.mxu0 %v509
      %532 = vmatprep.subr.bf16.mxu0 0
      %533 = vmatpush1.bf16.msra.mxu0 %v510
      %534 = vmatprep.subr.bf16.mxu0 0
      %535 = vmatpush1.bf16.msra.mxu0 %v511
      %536 = vmatprep.subr.bf16.mxu0 0
      %537 = vmatpush1.bf16.msra.mxu0 0
      %538 = vmatprep.subr.bf16.mxu0 0
      %539 = vmatpush1.bf16.msra.mxu0 0
      %540 = vmatprep.subr.bf16.mxu0 0
      %541 = vmatpush1.bf16.msra.mxu0 0
      %542 = vmatprep.subr.bf16.mxu0 0
      %543 = vmatpush1.bf16.msra.mxu0 0
      %544 = vmatprep.subr.bf16.mxu0 0
      %545 = vmatpush1.bf16.msra.mxu0 0
      %546 = vmatprep.subr.bf16.mxu0 0
      %547 = vmatpush1.bf16.msra.mxu0 0
      %548 = vmatprep.subr.bf16.mxu0 0
      %549 = vmatpush1.bf16.msra.mxu0 0
      %550 = vmatprep.subr.bf16.mxu0 0
      %551 = vmatpush1.bf16.msra.mxu0 0
      %552 = vmatprep.mubr.bf16.mxu0 0
      %553 = vmatmul.mubr.bf16.gmra.mrb[0].mxu0 %v441
      %v554 = vpop.f32.mrb[0].mxu0
      %v555 = vadd.f32 %v470, %v554
      %v556 = vpop.f32.mrb[0].mxu0
      %v557 = vpop.f32.mrb[0].mxu0
      %v558 = vadd.f32 %v470, %v557
      %v559 = vpop.f32.mrb[0].mxu0
      %560 = vmatprep.mubr.bf16.mxu0 0
      %561 = vmatmul.mubr.bf16.gmra.mrb[0].mxu0 %v442
      %v562 = vpop.f32.mrb[0].mxu0
      %v563 = vadd.f32 %v470, %v562
      %v564 = vpop.f32.mrb[0].mxu0
      %v565 = vpop.f32.mrb[0].mxu0
      %v566 = vadd.f32 %v470, %v565
      %v567 = vpop.f32.mrb[0].mxu0
      %568 = vmatprep.mubr.bf16.mxu0 0
      %569 = vmatmul.mubr.bf16.gmra.mrb[0].mxu0 %v443
      %v570 = vpop.f32.mrb[0].mxu0
      %v571 = vadd.f32 %v470, %v570
      %v572 = vpop.f32.mrb[0].mxu0
      %v573 = vpop.f32.mrb[0].mxu0
      %v574 = vadd.f32 %v470, %v573
      %v575 = vpop.f32.mrb[0].mxu0
      %576 = vmatprep.mubr.bf16.mxu0 0
      %577 = vmatmul.mubr.bf16.gmra.mrb[0].mxu0 %v444
      %v578 = vpop.f32.mrb[0].mxu0
      %v579 = vadd.f32 %v470, %v578
      %v580 = vpop.f32.mrb[0].mxu0
      %v581 = vpop.f32.mrb[0].mxu0
      %v582 = vadd.f32 %v470, %v581
      %v583 = vpop.f32.mrb[0].mxu0
      %584 = vmatprep.mubr.bf16.mxu0 0
      %585 = vmatmul.mubr.bf16.gmra.mrb[0].mxu0 %v445
      %v586 = vpop.f32.mrb[0].mxu0
      %v587 = vadd.f32 %v470, %v586
      %v588 = vpop.f32.mrb[0].mxu0
      %v589 = vpop.f32.mrb[0].mxu0
      %v590 = vadd.f32 %v470, %v589
      %v591 = vpop.f32.mrb[0].mxu0
      %592 = vmatprep.mubr.bf16.mxu0 0
      %593 = vmatmul.mubr.bf16.gmra.mrb[0].mxu0 %v446
      %v594 = vpop.f32.mrb[0].mxu0
      %v595 = vadd.f32 %v470, %v594
      %v596 = vpop.f32.mrb[0].mxu0
      %v597 = vpop.f32.mrb[0].mxu0
      %v598 = vadd.f32 %v470, %v597
      %v599 = vpop.f32.mrb[0].mxu0
      %600 = vmatprep.mubr.bf16.mxu0 0
      %601 = vmatmul.mubr.bf16.gmra.mrb[0].mxu0 %v447
      %v602 = vpop.f32.mrb[0].mxu0
      %v603 = vadd.f32 %v470, %v602
      %v604 = vpop.f32.mrb[0].mxu0
      %v605 = vpop.f32.mrb[0].mxu0
      %v606 = vadd.f32 %v470, %v605
      %v607 = vpop.f32.mrb[0].mxu0
      %608 = vmatprep.mubr.bf16.mxu0 0
      %609 = vmatmul.mubr.bf16.gmra.mrb[0].mxu0 %v448
      %v610 = vpop.f32.mrb[0].mxu0
      %v611 = vadd.f32 %v470, %v610
      %v612 = vpop.f32.mrb[0].mxu0
      %v613 = vpop.f32.mrb[0].mxu0
      %v614 = vadd.f32 %v470, %v613
      %v615 = vpop.f32.mrb[0].mxu0
      %616 = vdwg.mxu0
      %v617 = vld [vmem:[%s2] sm:$0xf]
      %v618 = vld [vmem:[%s2 + $0x4] sm:$0xf]
      %v619 = vld [vmem:[%s2 + $0x8] sm:$0xf]
      %v620 = vld [vmem:[%s2 + $0xc] sm:$0xf]
      %v621 = vld [vmem:[%s2 + $0x10] sm:$0xf]
      %v622 = vld [vmem:[%s2 + $0x14] sm:$0xf]
      %v623 = vld [vmem:[%s2 + $0x18] sm:$0xf]
      %v624 = vld [vmem:[%s2 + $0x1c] sm:$0xf]
      %v625 = vld [vmem:[%s2 + $0x20] sm:$0xf]
      %v626 = vld [vmem:[%s2 + $0x24] sm:$0xf]
      %v627 = vld [vmem:[%s2 + $0x28] sm:$0xf]
      %v628 = vld [vmem:[%s2 + $0x2c] sm:$0xf]
      %v629 = vld [vmem:[%s2 + $0x30] sm:$0xf]
      %v630 = vld [vmem:[%s2 + $0x34] sm:$0xf]
      %v631 = vld [vmem:[%s2 + $0x38] sm:$0xf]
      %v632 = vld [vmem:[%s2 + $0x3c] sm:$0xf]
      %v633 = vld [vmem:[#allocation8] sm:$0xf]
      %v634 = vld [vmem:[#allocation8 + $0x4] sm:$0xf]
      %v635 = vld [vmem:[#allocation8 + $0x8] sm:$0xf]
      %v636 = vld [vmem:[#allocation8 + $0xc] sm:$0xf]
      %v637 = vld [vmem:[#allocation8 + $0x10] sm:$0xf]
      %v638 = vld [vmem:[#allocation8 + $0x14] sm:$0xf]
      %v639 = vld [vmem:[#allocation8 + $0x18] sm:$0xf]
      %v640 = vld [vmem:[#allocation8 + $0x1c] sm:$0xf]
      %v641 = vld [vmem:[#allocation8 + $0x20] sm:$0xf]
      %v642 = vld [vmem:[#allocation8 + $0x24] sm:$0xf]
      %v643 = vld [vmem:[#allocation8 + $0x28] sm:$0xf]
      %v644 = vld [vmem:[#allocation8 + $0x2c] sm:$0xf]
      %v645 = vld [vmem:[#allocation8 + $0x30] sm:$0xf]
      %v646 = vld [vmem:[#allocation8 + $0x34] sm:$0xf]
      %v647 = vld [vmem:[#allocation8 + $0x38] sm:$0xf]
      %v648 = vld [vmem:[#allocation8 + $0x3c] sm:$0xf]
      %v665 = vunpack.c.l.b16 %v617
      %v666 = vunpack.c.l.b16 %v618
      %v667 = vunpack.c.l.b16 %v619
      %v668 = vunpack.c.l.b16 %v620
      %v669 = vunpack.c.l.b16 %v621
      %v670 = vunpack.c.l.b16 %v622
      %v671 = vunpack.c.l.b16 %v623
      %v672 = vunpack.c.l.b16 %v624
      %v673 = vunpack.c.l.b16 %v625
      %v674 = vunpack.c.l.b16 %v626
      %v675 = vunpack.c.l.b16 %v627
      %v676 = vunpack.c.l.b16 %v628
      %v677 = vunpack.c.l.b16 %v629
      %v678 = vunpack.c.l.b16 %v630
      %v679 = vunpack.c.l.b16 %v631
      %v680 = vunpack.c.l.b16 %v632
      %v681 = vpack.c.b16 %v666, %v665
      %v682 = vpack.c.b16 %v668, %v667
      %v683 = vpack.c.b16 %v670, %v669
      %v684 = vpack.c.b16 %v672, %v671
      %v685 = vpack.c.b16 %v674, %v673
      %v686 = vpack.c.b16 %v676, %v675
      %v687 = vpack.c.b16 %v678, %v677
      %v688 = vpack.c.b16 %v680, %v679
      %v713 = vunpack.c.l.b16 %v633
      %v714 = vunpack.c.l.b16 %v634
      %v715 = vunpack.c.l.b16 %v635
      %v716 = vunpack.c.l.b16 %v636
      %v717 = vunpack.c.l.b16 %v637
      %v718 = vunpack.c.l.b16 %v638
      %v719 = vunpack.c.l.b16 %v639
      %v720 = vunpack.c.l.b16 %v640
      %v721 = vunpack.c.l.b16 %v641
      %v722 = vunpack.c.l.b16 %v642
      %v723 = vunpack.c.l.b16 %v643
      %v724 = vunpack.c.l.b16 %v644
      %v725 = vunpack.c.l.b16 %v645
      %v726 = vunpack.c.l.b16 %v646
      %v727 = vunpack.c.l.b16 %v647
      %v728 = vunpack.c.l.b16 %v648
      %v729 = vpack.c.b16 %v714, %v713
      %v730 = vpack.c.b16 %v716, %v715
      %v731 = vpack.c.b16 %v718, %v717
      %v732 = vpack.c.b16 %v720, %v719
      %v733 = vpack.c.b16 %v722, %v721
      %v734 = vpack.c.b16 %v724, %v723
      %v735 = vpack.c.b16 %v726, %v725
      %v736 = vpack.c.b16 %v728, %v727
      %745 = vmatprep.subr.bf16.mxu0 0
      %746 = vmatpush1.bf16.msra.mxu0 %v729
      %747 = vmatprep.subr.bf16.mxu0 0
      %748 = vmatpush1.bf16.msra.mxu0 %v730
      %749 = vmatprep.subr.bf16.mxu0 0
      %750 = vmatpush1.bf16.msra.mxu0 %v731
      %751 = vmatprep.subr.bf16.mxu0 0
      %752 = vmatpush1.bf16.msra.mxu0 %v732
      %753 = vmatprep.subr.bf16.mxu0 0
      %754 = vmatpush1.bf16.msra.mxu0 %v733
      %755 = vmatprep.subr.bf16.mxu0 0
      %756 = vmatpush1.bf16.msra.mxu0 %v734
      %757 = vmatprep.subr.bf16.mxu0 0
      %758 = vmatpush1.bf16.msra.mxu0 %v735
      %759 = vmatprep.subr.bf16.mxu0 0
      %760 = vmatpush1.bf16.msra.mxu0 %v736
      %761 = vmatprep.subr.bf16.mxu0 0
      %762 = vmatpush1.bf16.msra.mxu0 0
      %763 = vmatprep.subr.bf16.mxu0 0
      %764 = vmatpush1.bf16.msra.mxu0 0
      %765 = vmatprep.subr.bf16.mxu0 0
      %766 = vmatpush1.bf16.msra.mxu0 0
      %767 = vmatprep.subr.bf16.mxu0 0
      %768 = vmatpush1.bf16.msra.mxu0 0
      %769 = vmatprep.subr.bf16.mxu0 0
      %770 = vmatpush1.bf16.msra.mxu0 0
      %771 = vmatprep.subr.bf16.mxu0 0
      %772 = vmatpush1.bf16.msra.mxu0 0
      %773 = vmatprep.subr.bf16.mxu0 0
      %774 = vmatpush1.bf16.msra.mxu0 0
      %775 = vmatprep.subr.bf16.mxu0 0
      %776 = vmatpush1.bf16.msra.mxu0 0
      %777 = vmatprep.mubr.bf16.mxu0 0
      %778 = vmatmul.mubr.bf16.gmra.mrb[0].mxu0 %v681
      %v779 = vpop.f32.mrb[0].mxu0
      %v780 = vadd.f32 0.0, %v779
      %v781 = vpop.f32.mrb[0].mxu0
      %v782 = vpop.f32.mrb[0].mxu0
      %v783 = vadd.f32 0.0, %v782
      %v784 = vpop.f32.mrb[0].mxu0
      %785 = vmatprep.mubr.bf16.mxu0 0
      %786 = vmatmul.mubr.bf16.gmra.mrb[0].mxu0 %v682
      %v787 = vpop.f32.mrb[0].mxu0
      %v788 = vadd.f32 0.0, %v787
      %v789 = vpop.f32.mrb[0].mxu0
      %v790 = vpop.f32.mrb[0].mxu0
      %v791 = vadd.f32 0.0, %v790
      %v792 = vpop.f32.mrb[0].mxu0
      %793 = vmatprep.mubr.bf16.mxu0 0
      %794 = vmatmul.mubr.bf16.gmra.mrb[0].mxu0 %v683
      %v795 = vpop.f32.mrb[0].mxu0
      %v796 = vadd.f32 0.0, %v795
      %v797 = vpop.f32.mrb[0].mxu0
      %v798 = vpop.f32.mrb[0].mxu0
      %v799 = vadd.f32 0.0, %v798
      %v800 = vpop.f32.mrb[0].mxu0
      %801 = vmatprep.mubr.bf16.mxu0 0
      %802 = vmatmul.mubr.bf16.gmra.mrb[0].mxu0 %v684
      %v803 = vpop.f32.mrb[0].mxu0
      %v804 = vadd.f32 0.0, %v803
      %v805 = vpop.f32.mrb[0].mxu0
      %v806 = vpop.f32.mrb[0].mxu0
      %v807 = vadd.f32 0.0, %v806
      %v808 = vpop.f32.mrb[0].mxu0
      %809 = vmatprep.mubr.bf16.mxu0 0
      %810 = vmatmul.mubr.bf16.gmra.mrb[0].mxu0 %v685
      %v811 = vpop.f32.mrb[0].mxu0
      %v812 = vadd.f32 0.0, %v811
      %v813 = vpop.f32.mrb[0].mxu0
      %v814 = vpop.f32.mrb[0].mxu0
      %v815 = vadd.f32 0.0, %v814
      %v816 = vpop.f32.mrb[0].mxu0
      %817 = vmatprep.mubr.bf16.mxu0 0
      %818 = vmatmul.mubr.bf16.gmra.mrb[0].mxu0 %v686
      %v819 = vpop.f32.mrb[0].mxu0
      %v820 = vadd.f32 0.0, %v819
      %v821 = vpop.f32.mrb[0].mxu0
      %v822 = vpop.f32.mrb[0].mxu0
      %v823 = vadd.f32 0.0, %v822
      %v824 = vpop.f32.mrb[0].mxu0
      %825 = vmatprep.mubr.bf16.mxu0 0
      %826 = vmatmul.mubr.bf16.gmra.mrb[0].mxu0 %v687
      %v827 = vpop.f32.mrb[0].mxu0
      %v828 = vadd.f32 0.0, %v827
      %v829 = vpop.f32.mrb[0].mxu0
      %v830 = vpop.f32.mrb[0].mxu0
      %v831 = vadd.f32 0.0, %v830
      %v832 = vpop.f32.mrb[0].mxu0
      %833 = vmatprep.mubr.bf16.mxu0 0
      %834 = vmatmul.mubr.bf16.gmra.mrb[0].mxu0 %v688
      %v835 = vpop.f32.mrb[0].mxu0
      %v836 = vadd.f32 0.0, %v835
      %v837 = vpop.f32.mrb[0].mxu0
      %v838 = vpop.f32.mrb[0].mxu0
      %v839 = vadd.f32 0.0, %v838
      %v840 = vpop.f32.mrb[0].mxu0
      %841 = vdwg.mxu0
      %v842 = vadd.f32 %v555, %v780
      %v843 = vadd.f32 %v558, %v783
      %v844 = vadd.f32 %v563, %v788
      %v845 = vadd.f32 %v566, %v791
      %v846 = vadd.f32 %v571, %v796
      %v847 = vadd.f32 %v574, %v799
      %v848 = vadd.f32 %v579, %v804
      %v849 = vadd.f32 %v582, %v807
      %v850 = vadd.f32 %v587, %v812
      %v851 = vadd.f32 %v590, %v815
      %v852 = vadd.f32 %v595, %v820
      %v853 = vadd.f32 %v598, %v823
      %v854 = vadd.f32 %v603, %v828
      %v855 = vadd.f32 %v606, %v831
      %v856 = vadd.f32 %v611, %v836
      %v857 = vadd.f32 %v614, %v839
      %v858 = vmax.f32 %v842, 0.0
      %v859 = vmax.f32 %v843, 0.0
      %v860 = vmax.f32 %v844, 0.0
      %v861 = vmax.f32 %v845, 0.0
      %v862 = vmax.f32 %v846, 0.0
      %v863 = vmax.f32 %v847, 0.0
      %v864 = vmax.f32 %v848, 0.0
      %v865 = vmax.f32 %v849, 0.0
      %v866 = vmax.f32 %v850, 0.0
      %v867 = vmax.f32 %v851, 0.0
      %v868 = vmax.f32 %v852, 0.0
      %v869 = vmax.f32 %v853, 0.0
      %v870 = vmax.f32 %v854, 0.0
      %v871 = vmax.f32 %v855, 0.0
      %v872 = vmax.f32 %v856, 0.0
      %v873 = vmax.f32 %v857, 0.0
      %v874 = vpack.c.bf16 %v859, %v858
      %v875 = vpack.c.bf16 %v861, %v860
      %v876 = vpack.c.bf16 %v863, %v862
      %v877 = vpack.c.bf16 %v865, %v864
      %v878 = vpack.c.bf16 %v867, %v866
      %v879 = vpack.c.bf16 %v869, %v868
      %v880 = vpack.c.bf16 %v871, %v870
      %v881 = vpack.c.bf16 %v873, %v872
      %v890 = vunpack.c.l.b16 %v874
      %v891 = vunpack.c.h.b16 %v874
      %v892 = vunpack.c.l.b16 %v875
      %v893 = vunpack.c.h.b16 %v875
      %v894 = vunpack.c.l.b16 %v876
      %v895 = vunpack.c.h.b16 %v876
      %v896 = vunpack.c.l.b16 %v877
      %v897 = vunpack.c.h.b16 %v877
      %v898 = vunpack.c.l.b16 %v878
      %v899 = vunpack.c.h.b16 %v878
      %v900 = vunpack.c.l.b16 %v879
      %v901 = vunpack.c.h.b16 %v879
      %v902 = vunpack.c.l.b16 %v880
      %v903 = vunpack.c.h.b16 %v880
      %v904 = vunpack.c.l.b16 %v881
      %v905 = vunpack.c.h.b16 %v881
      %v906 = vpack.c.b16 %v890, %v890
      %v907 = vpack.c.b16 %v891, %v891
      %v908 = vpack.c.b16 %v892, %v892
      %v909 = vpack.c.b16 %v893, %v893
      %v910 = vpack.c.b16 %v894, %v894
      %v911 = vpack.c.b16 %v895, %v895
      %v912 = vpack.c.b16 %v896, %v896
      %v913 = vpack.c.b16 %v897, %v897
      %v914 = vpack.c.b16 %v898, %v898
      %v915 = vpack.c.b16 %v899, %v899
      %v916 = vpack.c.b16 %v900, %v900
      %v917 = vpack.c.b16 %v901, %v901
      %v918 = vpack.c.b16 %v902, %v902
      %v919 = vpack.c.b16 %v903, %v903
      %v920 = vpack.c.b16 %v904, %v904
      %v921 = vpack.c.b16 %v905, %v905
      %938 = vst [vmem:[#allocation9] sm:$0xf] %v906
      %939 = vst [vmem:[#allocation9 + $0x4] sm:$0xf] %v907
      %940 = vst [vmem:[#allocation9 + $0x8] sm:$0xf] %v908
      %941 = vst [vmem:[#allocation9 + $0xc] sm:$0xf] %v909
      %942 = vst [vmem:[#allocation9 + $0x10] sm:$0xf] %v910
      %943 = vst [vmem:[#allocation9 + $0x14] sm:$0xf] %v911
      %944 = vst [vmem:[#allocation9 + $0x18] sm:$0xf] %v912
      %945 = vst [vmem:[#allocation9 + $0x1c] sm:$0xf] %v913
      %946 = vst [vmem:[#allocation9 + $0x20] sm:$0xf] %v914
      %947 = vst [vmem:[#allocation9 + $0x24] sm:$0xf] %v915
      %948 = vst [vmem:[#allocation9 + $0x28] sm:$0xf] %v916
      %949 = vst [vmem:[#allocation9 + $0x2c] sm:$0xf] %v917
      %950 = vst [vmem:[#allocation9 + $0x30] sm:$0xf] %v918
      %951 = vst [vmem:[#allocation9 + $0x34] sm:$0xf] %v919
      %952 = vst [vmem:[#allocation9 + $0x38] sm:$0xf] %v920
      %953 = vst [vmem:[#allocation9 + $0x3c] sm:$0xf] %v921
    $region49: #{tpu_custom_call.1} parent=1 // pred_fallthru
      _
    // Predicated region
    $region50: #{tpu_custom_call.1} parent=1 // pred_check
      _
    $region51: #{tpu_custom_call.1} parent=1 // pred_check_branch
      %955 = sbr.rel (0) target = $region53
    $region52: #{tpu_custom_call.1} parent=1 // pred_region
      %s957 = ssub.s32 1024, 1024
      %958 = vsyncadd [#allocation5], %s957
      %s959 = sshll.u32 [#allocation9], 4
      %s960 = int_to_ptr.vmem [resolvable:$true] %s959
      %965 = dma.vmem_to_hbm [thread:$0]  %s960, 1024, %s7, [#allocation5], 64, 64, 4
    $region53: #{tpu_custom_call.1} parent=1 // pred_fallthru
      _
    // Predicated region
    $region54: #{tpu_custom_call.1} parent=1 // pred_check
      _
    $region55: #{tpu_custom_call.1} parent=1 // pred_check_branch
      %967 = sbr.rel (0) target = $region57
    $region56: #{tpu_custom_call.1} parent=1 // pred_region
      %968 = dma.done [#allocation5], 1024
    $region57: #{tpu_custom_call.1} parent=1 // pred_fallthru
      _
    %969 = vsyncpa [#allocation4], 1
    %970 = vsyncpa [#allocation7], 1
    %971 = vsyncpa [#allocation5], 1

</llo_original>
